<compile_context>
chip_gen: v7x
topology: tpu7x:2x2x1
jax: 0.10.0
libtpu: 0.0.40
codegen_flags: <defaults>
</compile_context>

<pallas_src>
import jax
import jax.numpy as jnp
from jax import lax
from jax.experimental import pallas as pl
from jax.experimental.pallas import tpu as pltpu

LANES = 128
SUBLANES = 8
MAX_COL_BLK = 8192      # lanes per block (multiple of 128); caps kernel unroll at 64 slabs
MAX_ROW_BLK = 4096      # keeps the (row_blk, 128) f32 partial-sum slabs small (<= 2 MiB)


def _cdiv(a, b):
    return -(-a // b)


def _round_up(x, m):
    return _cdiv(x, m) * m


def _vmem_budget():
    """(target HBM bytes per streamed input block, scoped vmem_limit_bytes)."""
    mib = 1024 * 1024
    try:
        cap = pltpu.get_tpu_info().vmem_capacity_bytes
    except Exception:
        return 2 * mib, 32 * mib              # conservative fallback, proven safe
    if cap >= 100 * mib:                      # v4 / v5e / v6e (128 MiB VMEM)
        return 8 * mib, 64 * mib
    if cap >= 56 * mib:                       # v7x (64 MiB VMEM)
        return 6 * mib, 48 * mib
    return mib, min(cap // 2, 16 * mib)       # older / small-VMEM parts


def _choose_tiling(n_rows, n_cols, itemsize, target_block_bytes):
    """Pick (row_blk, col_blk) for a (n_rows, n_cols) slab of `itemsize`-byte elems."""
    if itemsize >= 4:
        sub = SUBLANES                         # f32
    elif itemsize == 2:
        sub = 2 * SUBLANES                     # bf16 / f16 sublane packing
    else:
        sub = 4 * SUBLANES                     # int8 / fp8
    col_blk = min(_round_up(n_cols, LANES), MAX_COL_BLK)
    budget_rows = max(sub, (target_block_bytes // (col_blk * itemsize)) // sub * sub)
    row_blk = min(budget_rows, MAX_ROW_BLK, _round_up(n_rows, sub))
    # v7x has 2 TensorCores: keep both busy by giving the "parallel" row axis at
    # least 2 blocks when rows allow it and blocks stay near the target size.
    if (_cdiv(n_rows, row_blk) < 2 and n_rows > sub
            and row_blk * col_blk * itemsize >= target_block_bytes):
        row_blk = max(sub, _round_up(_cdiv(n_rows, 2), sub))
    # TODO(synk): for tiny B*C on v7x, also split the column axis into parallel
    # halves (separate partial-sum output columns summed in the wrapper).
    return row_blk, col_blk


def _make_row_sums_kernel(n_cols, row_blk, col_blk, n_col_blocks, need_col_mask):
    """Kernel producing lane-dense per-row partial sums of (x - t)^2."""
    n_groups = col_blk // LANES

    def kernel(x_ref, t_ref, o_ref):
        if need_col_mask:
            # Hoisted once (JAX does not CSE broadcast_in_dim inside the loop).
            lane_ids = lax.broadcasted_iota(jnp.int32, (row_blk, LANES), 1)
            col0 = pl.program_id(1) * col_blk

        acc = None
        for g in range(n_groups):              # static unroll: pure VPU slab adds
            sl = slice(g * LANES, (g + 1) * LANES)
            d = x_ref[:, sl].astype(jnp.float32) - t_ref[:, sl].astype(jnp.float32)
            if need_col_mask:
                d = jnp.where(col0 + (g * LANES) + lane_ids < n_cols, d, 0.0)
            sq = d * d
            acc = sq if acc is None else acc + sq

        if n_col_blocks == 1:
            # Single column block: store directly, no init/accumulate traffic.
            o_ref[...] = acc
        else:
            @pl.when(pl.program_id(1) == 0)
            def _():
                o_ref[...] = jnp.zeros_like(o_ref)

            o_ref[...] += acc                   # output block is VMEM-resident over c

    return kernel


def _normalize_weights(weights, B, C):
    """Validate the per-(batch, channel) weight assumption; return (B, C) f32."""
    w = jnp.asarray(weights, jnp.float32)
    if w.ndim == 0:
        return jnp.broadcast_to(w, (B, C))
    if w.ndim == 1 and w.shape[0] in (1, C):
        return jnp.broadcast_to(w.reshape(1, -1), (B, C))
    if w.ndim == 2 and w.shape[0] in (1, B) and w.shape[1] in (1, C):
        return jnp.broadcast_to(w, (B, C))
    if w.ndim == 4:
        if w.shape[2] != 1 or w.shape[3] != 1:
            # TODO(synk): fully elementwise weights would need a third streamed input.
            raise NotImplementedError("weights must be constant over spatial dims")
        if w.shape[0] not in (1, B) or w.shape[1] not in (1, C):
            raise NotImplementedError(f"weights shape {w.shape} not broadcastable")
        return jnp.broadcast_to(w[:, :, 0, 0], (B, C))
    raise NotImplementedError(f"unsupported weights shape {w.shape}")


def weighted_mse_loss(inputs, targets, weights, reduction="mean"):
    """Pallas implementation of weighted_MSELoss.forward (per-channel weights)."""
    assert inputs.shape == targets.shape
    assert inputs.ndim == 4, "expects NCHW inputs"
    if reduction not in ("mean", "sum"):
        # TODO(synk): reduction='none' (elementwise batch_loss output) not implemented.
        raise NotImplementedError("only 'mean' and 'sum' reductions supported")

    B, C, H, W = inputs.shape
    R, HW = B * C, H * W
    n_elems = inputs.size

    x2 = inputs.reshape(R, HW)      # free reshape, native dtype (no cast/pad copy)
    t2 = targets.reshape(R, HW)

    target_block_bytes, vmem_limit = _vmem_budget()
    itemsize = jnp.dtype(inputs.dtype).itemsize
    row_blk, col_blk = _choose_tiling(R, HW, itemsize, target_block_bytes)

    n_row_blocks = _cdiv(R, row_blk)
    n_col_blocks = _cdiv(HW, col_blk)
    need_col_mask = (HW % col_blk) != 0

    kernel = _make_row_sums_kernel(HW, row_blk, col_blk, n_col_blocks, need_col_mask)
    in_spec = pl.BlockSpec((row_blk, col_blk), lambda r, c: (r, c))
    # TODO(synk): sweep pipeline_mode=pl.Buffered(3) on in_specs for v7x (measure).

    partials = pl.pallas_call(
        kernel,
        out_shape=jax.ShapeDtypeStruct((R, LANES), jnp.float32),   # lane-dense output
        grid_spec=pltpu.PrefetchScalarGridSpec(
            num_scalar_prefetch=0,
            grid=(n_row_blocks, n_col_blocks),                      # reduction axis last
            in_specs=[in_spec, in_spec],
            out_specs=pl.BlockSpec((row_blk, LANES), lambda r, c: (r, 0)),
        ),
        compiler_params=pltpu.CompilerParams(
            dimension_semantics=("parallel", "arbitrary"),
            vmem_limit_bytes=vmem_limit,
        ),
    )(x2, t2)

    # Per-(batch, channel) lane sum + weighting: tiny XLA ops on (R, 128) / (B, C).
    row_sums = jnp.sum(partials, axis=-1)                           # (R,)
    w_bc = _normalize_weights(weights, B, C)
    loss = jnp.sum(row_sums.reshape(B, C) * w_bc)
    if reduction == "mean":
        loss = loss / jnp.float32(n_elems)
    return loss


def _reference(inputs, targets, weights, reduction="mean"):
    diff = inputs.astype(jnp.float32) - targets.astype(jnp.float32)
    batch_loss = diff * diff * jnp.asarray(weights, jnp.float32)
    if reduction == "mean":
        return jnp.mean(batch_loss)
    return jnp.sum(batch_loss)


if __name__ == "__main__":
    key = jax.random.PRNGKey(0)
    k1, k2, k3 = jax.random.split(key, 3)

    B, C, H, W = 2, 4, 16, 16  # NCHW
    inputs = jax.random.normal(k1, (B, C, H, W), dtype=jnp.float32)
    targets = jax.random.normal(k2, (B, C, H, W), dtype=jnp.float32)
    # Deterministic per-channel weights (module __init__ takes arbitrary weights).
    weights = jax.random.uniform(k3, (1, C, 1, 1), dtype=jnp.float32) + 0.5

    out = jax.block_until_ready(weighted_mse_loss(inputs, targets, weights, "mean"))
    ref = _reference(inputs, targets, weights, "mean")
    assert jnp.allclose(out, ref, rtol=1e-5, atol=1e-6), (out, ref)

    # Awkward (non-multiple-of-(8,128)) shape: exercises the in-kernel tail-column
    # mask and the partial output-block store (no jnp.pad of the inputs).
    B2, C2, H2, W2 = 2, 3, 10, 10
    i2 = jax.random.normal(k1, (B2, C2, H2, W2), dtype=jnp.float32)
    t2 = jax.random.normal(k2, (B2, C2, H2, W2), dtype=jnp.float32)
    w2 = jax.random.uniform(k3, (1, C2, 1, 1), dtype=jnp.float32) + 0.5
    out2 = jax.block_until_ready(weighted_mse_loss(i2, t2, w2, "sum"))
    ref2 = _reference(i2, t2, w2, "sum")
    assert jnp.allclose(out2, ref2, rtol=1e-5, atol=1e-5), (out2, ref2)

    print("KERNEL_OK")
</pallas_src>

<mosaic_0001>
module attributes {stable_mosaic.version = 11 : i64} {
  func.func @kernel(%arg0: i32, %arg1: i32, %arg2: memref<8x256xf32, #tpu.memory_space<vmem>>, %arg3: memref<8x256xf32, #tpu.memory_space<vmem>>, %arg4: memref<8x128xf32, #tpu.memory_space<vmem>>) attributes {dimension_semantics = [#tpu.dimension_semantics<parallel>, #tpu.dimension_semantics<arbitrary>], iteration_bounds = array<i64: 1, 1>, scalar_prefetch = 0 : i64, scratch_operands = 0 : i64, tpu.core_type = #tpu.core_type<tc>, window_params = [{transform_indices = @transform_0, window_bounds = array<i64: 8, 256>}, {transform_indices = @transform_1, window_bounds = array<i64: 8, 256>}, {transform_indices = @transform_2, window_bounds = array<i64: 8, 128>}]} {
    %c0 = arith.constant 0 : index
    %c0_0 = arith.constant 0 : index
    %0 = vector.load %arg2[%c0, %c0_0] : memref<8x256xf32, #tpu.memory_space<vmem>>, vector<8x128xf32>
    %c0_1 = arith.constant 0 : index
    %c0_2 = arith.constant 0 : index
    %1 = vector.load %arg3[%c0_1, %c0_2] : memref<8x256xf32, #tpu.memory_space<vmem>>, vector<8x128xf32>
    %2 = arith.subf %0, %1 : vector<8x128xf32>
    %3 = arith.mulf %2, %2 : vector<8x128xf32>
    %c0_3 = arith.constant 0 : index
    %c128 = arith.constant 128 : index
    %4 = vector.load %arg2[%c0_3, %c128] : memref<8x256xf32, #tpu.memory_space<vmem>>, vector<8x128xf32>
    %c0_4 = arith.constant 0 : index
    %c128_5 = arith.constant 128 : index
    %5 = vector.load %arg3[%c0_4, %c128_5] : memref<8x256xf32, #tpu.memory_space<vmem>>, vector<8x128xf32>
    %6 = arith.subf %4, %5 : vector<8x128xf32>
    %7 = arith.mulf %6, %6 : vector<8x128xf32>
    %8 = arith.addf %3, %7 : vector<8x128xf32>
    %c0_6 = arith.constant 0 : index
    %c0_7 = arith.constant 0 : index
    %9 = vector.load %arg4[%c0_6, %c0_7] : memref<8x128xf32, #tpu.memory_space<vmem>>, vector<8x128xf32>
    tpu.vector_store %arg4[%c0_6, %c0_7], %8 {strides = array<i32>} : memref<8x128xf32, #tpu.memory_space<vmem>>, vector<8x128xf32>,
    return
  }
  func.func @transform_0(%arg0: i32, %arg1: i32) -> (i32, i32) {
    %c0_i32 = arith.constant 0 : i32
    return %arg0, %arg1 : i32, i32
  }
  func.func @transform_1(%arg0: i32, %arg1: i32) -> (i32, i32) {
    %c0_i32 = arith.constant 0 : i32
    return %arg0, %arg1 : i32, i32
  }
  func.func @transform_2(%arg0: i32, %arg1: i32) -> (i32, i32) {
    %c0_i32 = arith.constant 0 : i32
    %c0_i32_0 = arith.constant 0 : i32
    return %arg0, %c0_i32 : i32, i32
  }
}

</mosaic_0001>

<llo_original>
// kernel: tpu_custom_call.1
$region0: #{tpu_custom_call.1}
  #allocation0 [shape = 'u32[]', space=smem, size = 0x4, offset = 0x4, fixed_abs, tag = 'smem constant byte address 0x4 - core index']
  #allocation1 [shape = 'u32[144,128]{1,0:T(1,128)}', space=vmem, size = 0x12000, scoped, tag = 'internal scratch']
  %s0 = inlined_call_operand.hbm [shape: f32[8,256], index: 0, kind: input, shape index: {}]
  %s1 = inlined_call_operand.hbm [shape: f32[8,256], index: 1, kind: input, shape index: {}]
  %s2 = inlined_call_operand.hbm [shape: f32[8,128], index: 2, kind: output, shape index: {}]
  %s3 = sld [smem:[#allocation0]]
  $region26: #{tpu_custom_call.1} parent=0
    _
  %s5 = ssub.s32 1, %s3
  %s6 = scalar_select 0, %s5, %s3
  $region1: #{tpu_custom_call.1} parent=0
    #allocation2 [shape = 'u8[8192]{0}', space=vmem, size = 0x2000, scoped, tag = 'input window, operand 0, single buffered']
    #allocation3 [shape = 's32[1]{0}', space=sflag, size = 0x4, scoped, tag = 'scoped memory for tpu_custom_call.1']
    #allocation4 [shape = 's32[1]{0}', space=sflag, size = 0x4, scoped, tag = 'scoped memory for tpu_custom_call.1']
    #allocation5 [shape = 'u8[8192]{0}', space=vmem, size = 0x2000, scoped, tag = 'input window, operand 1, single buffered']
    #allocation6 [shape = 's32[1]{0}', space=sflag, size = 0x4, scoped, tag = 'scoped memory for tpu_custom_call.1']
    #allocation7 [shape = 'u8[4096]{0}', space=vmem, size = 0x1000, scoped, tag = 'output window, operand 0, single buffered']
    %7 = vsyncpa [#allocation3], 0
    %8 = vsyncpa [#allocation6], 0
    %9 = vsyncpa [#allocation4], 0
    // Predicated region
    $region2: #{tpu_custom_call.1} parent=1 // pred_check
      _
    $region3: #{tpu_custom_call.1} parent=1 // pred_check_branch
      %11 = sbr.rel (0) target = $region5
    $region4: #{tpu_custom_call.1} parent=1 // pred_region
      %s13 = ssub.s32 256, 256
      %14 = vsyncadd [#allocation3], %s13
      %s16 = sshll.u32 [#allocation2], 4
      %s17 = int_to_ptr.vmem [resolvable:$true] %s16
      %19 = dma.hbm_to_vmem [thread:$0]  %s0, 256, %s17, [#allocation3]
    $region5: #{tpu_custom_call.1} parent=1 // pred_fallthru
      _
    // Predicated region
    $region6: #{tpu_custom_call.1} parent=1 // pred_check
      _
    $region7: #{tpu_custom_call.1} parent=1 // pred_check_branch
      %21 = sbr.rel (0) target = $region9
    $region8: #{tpu_custom_call.1} parent=1 // pred_region
      %s23 = ssub.s32 256, 256
      %24 = vsyncadd [#allocation6], %s23
      %s26 = sshll.u32 [#allocation5], 4
      %s27 = int_to_ptr.vmem [resolvable:$true] %s26
      %29 = dma.hbm_to_vmem [thread:$0]  %s1, 256, %s27, [#allocation6]
    $region9: #{tpu_custom_call.1} parent=1 // pred_fallthru
      _
    // Predicated region
    $region10: #{tpu_custom_call.1} parent=1 // pred_check
      _
    $region11: #{tpu_custom_call.1} parent=1 // pred_check_branch
      %31 = sbr.rel (0) target = $region13
    $region12: #{tpu_custom_call.1} parent=1 // pred_region
      %32 = dma.done [#allocation3], 256
    $region13: #{tpu_custom_call.1} parent=1 // pred_fallthru
      _
    // Predicated region
    $region14: #{tpu_custom_call.1} parent=1 // pred_check
      _
    $region15: #{tpu_custom_call.1} parent=1 // pred_check_branch
      %34 = sbr.rel (0) target = $region17
    $region16: #{tpu_custom_call.1} parent=1 // pred_region
      %35 = dma.done [#allocation6], 256
    $region17: #{tpu_custom_call.1} parent=1 // pred_fallthru
      _
    %v36 = vld [vmem:[#allocation2] sm:$0xff]
    %v37 = vld [vmem:[#allocation5] sm:$0xff]
    %v38 = vsub.f32 %v36, %v37
    %v39 = vmul.f32 %v38, %v38
    %v40 = vld [vmem:[#allocation2 + $0x8] sm:$0xff]
    %v41 = vld [vmem:[#allocation5 + $0x8] sm:$0xff]
    %v42 = vsub.f32 %v40, %v41
    %v43 = vmul.f32 %v42, %v42
    %v44 = vadd.f32 %v39, %v43
    %45 = vst [vmem:[#allocation7] sm:$0xff] %v44
    // Predicated region
    $region18: #{tpu_custom_call.1} parent=1 // pred_check
      _
    $region19: #{tpu_custom_call.1} parent=1 // pred_check_branch
      %47 = sbr.rel (0) target = $region21
    $region20: #{tpu_custom_call.1} parent=1 // pred_region
      %s49 = ssub.s32 128, 128
      %50 = vsyncadd [#allocation4], %s49
      %s52 = sshll.u32 [#allocation7], 4
      %s53 = int_to_ptr.vmem [resolvable:$true] %s52
      %55 = dma.vmem_to_hbm [thread:$0]  %s53, 128, %s2, [#allocation4]
    $region21: #{tpu_custom_call.1} parent=1 // pred_fallthru
      _
    // Predicated region
    $region22: #{tpu_custom_call.1} parent=1 // pred_check
      _
    $region23: #{tpu_custom_call.1} parent=1 // pred_check_branch
      %57 = sbr.rel (0) target = $region25
    $region24: #{tpu_custom_call.1} parent=1 // pred_region
      %58 = dma.done [#allocation4], 128
    $region25: #{tpu_custom_call.1} parent=1 // pred_fallthru
      _
    %59 = vsyncpa [#allocation3], 1
    %60 = vsyncpa [#allocation6], 1
    %61 = vsyncpa [#allocation4], 1

</llo_original>
